<compile_context>
chip_gen: v7x
topology: tpu7x:2x2x1
jax: 0.10.0
libtpu: 0.0.40
codegen_flags: <defaults>
</compile_context>

<pallas_src>
import jax
import jax.numpy as jnp
from jax import lax
from jax.experimental import pallas as pl
from jax.experimental.pallas import tpu as pltpu

NEG_SLOPE = 0.01   # nn.LeakyReLU default
BN_EPS = 1e-5      # nn.BatchNorm3d default
PAD_NEG = -1e30    # bias on padded output columns -> softmax prob 0


def _round_up(x, m):
    return ((x + m - 1) // m) * m


def _leaky_relu(x):
    return jnp.where(x > 0, x, NEG_SLOPE * x)


def _vmem_capacity_bytes():
    try:
        return int(pltpu.get_tpu_info().vmem_capacity_bytes)
    except Exception:
        return 64 * 1024 * 1024   # conservative fallback (v7x per-TC VMEM)


def policy_head_kernel(x_ref, wconv_ref, params_ref, w_ref, b2_ref, o_ref):
    # x_ref     : (C, TB, Sp) VMEM  channel-major, batch-blocked input
    # wconv_ref : (C,)        SMEM  conv1 weight (1x1x1 conv == channel reduce)
    # params_ref: (6,)        SMEM  [conv_b, gamma, beta, run_mean, run_var, eps]
    # w_ref     : (Sp, Sp)    VMEM  ln2 weight, pre-transposed to (in, out), resident
    # b2_ref    : (1, Sp)     VMEM  ln2 bias (padded tail = PAD_NEG)
    # o_ref     : (TB, Sp)    output probabilities
    conv_b = params_ref[0]
    gamma = params_ref[1]
    beta = params_ref[2]
    mean = params_ref[3]
    var = params_ref[4]
    eps = params_ref[5]

    # --- fold conv bias + BN (inference) into one scalar scale/shift ---
    a = gamma * lax.rsqrt(var + eps)
    shift = a * (conv_b - mean) + beta

    # --- conv1 (1x1x1): per-channel scalar scale, unrolled VALU accumulation
    #     over the (static, small) leading C axis -> (TB, Sp) ---
    C = x_ref.shape[0]
    y = x_ref[0] * (wconv_ref[0] * a)
    for c in range(1, C):
        y = y + x_ref[c] * (wconv_ref[c] * a)
    y = y + shift

    # --- flatten (already flat) + LeakyReLU ---
    y = _leaky_relu(y)

    # --- ln2: Linear(F, F), canonical (M,K)x(K,N) MXU feed, f32 accumulate ---
    z = jnp.dot(y.astype(w_ref.dtype), w_ref[...],
                preferred_element_type=jnp.float32)
    z = z + b2_ref[...]
    z = _leaky_relu(z)

    # --- softmax over the feature axis (padded tail contributes exp(~-inf)=0) ---
    m = jnp.max(z, axis=-1, keepdims=True)
    e = jnp.exp(z - m)
    denom = jnp.sum(e, axis=-1, keepdims=True)
    # exact reciprocal to preserve the strict sum-to-1 invariant
    p = e * pl.reciprocal(denom, approx=False)
    o_ref[...] = p.astype(o_ref.dtype)


def _choose_tb(N, C, Sp, w_bytes, budget, tb_cap):
    """Largest batch block (multiple of 8, <= tb_cap) fitting the VMEM budget.

    Budgets: 2x double-buffered x block + 2x double-buffered out block +
    ~4 (TB, Sp) f32 in-kernel intermediates (y, z, e, p) + resident weight.
    """
    cap = min(tb_cap, _round_up(max(N, 1), 8))
    for tb in sorted({cap, 512, 256, 128, 64, 32, 16, 8}, reverse=True):
        if tb > cap:
            continue
        blocks = (2 * tb * C * Sp * 4      # x (double-buffered)
                  + 2 * tb * Sp * 4        # out (double-buffered)
                  + 4 * tb * Sp * 4)       # y / z / e / p intermediates
        if blocks + w_bytes + Sp * 4 <= budget:
            return tb
    return 8


def policy_head_forward(x_ncdhw, conv_w, conv_b, bn_gamma, bn_beta,
                        bn_mean, bn_var, lin_w, lin_b,
                        *, linear_weight_dtype=jnp.bfloat16):
    """x_ncdhw: (N, C, D, H, W) float32. Returns (N, D*H*W) float32."""
    N, C, D, H, W = x_ncdhw.shape
    S = D * H * W
    Sp = _round_up(S, 128)                    # lane-dense feature axis

    vmem_cap = _vmem_capacity_bytes()
    if vmem_cap >= 96 * 1024 * 1024:          # v5e / v6e (128 MiB VMEM)
        budget, tb_cap = 96 * 1024 * 1024, 512
    else:                                     # v7x (64 MiB VMEM)
        budget, tb_cap = 44 * 1024 * 1024, 256

    # --- glue: layout plumbing only (no compute hoisted out of the kernel) ---
    x_cns = jnp.transpose(x_ncdhw.reshape(N, C, S), (1, 0, 2))   # (C, N, S)
    if Sp != S:
        x_cns = jnp.pad(x_cns, ((0, 0), (0, 0), (0, Sp - S)))

    # ln2 weight: PyTorch (out, in) -> pre-transpose once to (in, out); the
    # zero padding on the `in` axis cancels the non-zero padded y columns.
    w2 = lin_w.T.astype(linear_weight_dtype)
    if Sp != S:
        w2 = jnp.pad(w2, ((0, Sp - S), (0, Sp - S)))
    w_bytes = Sp * Sp * jnp.dtype(linear_weight_dtype).itemsize

    TB = _choose_tb(N, C, Sp, w_bytes, budget, tb_cap)
    # Ensure >=2 grid steps when the batch allows it (megacore on v7x).
    if N > 8 and TB >= N:
        TB = min(TB, _round_up((N + 1) // 2, 8))
    Np = _round_up(N, TB)
    if Np != N:
        x_cns = jnp.pad(x_cns, ((0, 0), (0, Np - N), (0, 0)))

    wconv = conv_w.reshape(C).astype(jnp.float32)                # SMEM scalars
    params = jnp.array(
        [conv_b[0], bn_gamma[0], bn_beta[0], bn_mean[0], bn_var[0], BN_EPS],
        dtype=jnp.float32)                                       # (6,) SMEM

    b2 = lin_b.astype(jnp.float32)
    if Sp != S:
        b2 = jnp.pad(b2, ((0, Sp - S),), constant_values=PAD_NEG)
    b2 = b2.reshape(1, Sp)

    # VMEM: double-buffered x/out blocks + intermediates + resident weight.
    x_block = TB * C * Sp * 4
    o_block = TB * Sp * 4
    inter = 4 * TB * Sp * 4
    needed = 2 * x_block + 2 * o_block + inter + w_bytes + Sp * 4 + (1 << 16)
    vmem_limit = int(min(max(needed * 3 // 2, 32 * 1024 * 1024),
                         (vmem_cap * 9) // 10))

    cost = pl.CostEstimate(
        flops=2 * Np * Sp * Sp + 2 * Np * C * Sp,
        transcendentals=Np * Sp,
        bytes_accessed=Np * C * Sp * 4 + w_bytes + Np * Sp * 4 + Sp * 4)

    out = pl.pallas_call(
        policy_head_kernel,
        out_shape=jax.ShapeDtypeStruct((Np, Sp), jnp.float32),
        grid=(Np // TB,),
        in_specs=[
            pl.BlockSpec((C, TB, Sp), lambda i: (0, i, 0)),        # x (pipelined)
            pl.BlockSpec(memory_space=pltpu.MemorySpace.SMEM),     # conv w scalars
            pl.BlockSpec(memory_space=pltpu.MemorySpace.SMEM),     # bn/conv-bias scalars
            pl.BlockSpec(memory_space=pltpu.MemorySpace.VMEM),     # ln2 W (resident)
            pl.BlockSpec(memory_space=pltpu.MemorySpace.VMEM),     # ln2 b (resident)
        ],
        out_specs=pl.BlockSpec((TB, Sp), lambda i: (i, 0)),
        compiler_params=pltpu.CompilerParams(
            dimension_semantics=("parallel",),
            vmem_limit_bytes=vmem_limit),
        cost_estimate=cost,
    )(x_cns, wconv, params, w2, b2)

    return out[:N, :S]


def _reference(x_ncdhw, conv_w, conv_b, bn_gamma, bn_beta, bn_mean, bn_var,
               lin_w, lin_b):
    N, C, D, H, W = x_ncdhw.shape
    S = D * H * W
    x = x_ncdhw.reshape(N, C, S)
    y = jnp.einsum("ncs,c->ns", x, conv_w.reshape(C)) + conv_b[0]
    y = (y - bn_mean[0]) / jnp.sqrt(bn_var[0] + BN_EPS) * bn_gamma[0] + bn_beta[0]
    y = jnp.where(y > 0, y, NEG_SLOPE * y)
    z = y @ lin_w.T + lin_b
    z = jnp.where(z > 0, z, NEG_SLOPE * z)
    return jax.nn.softmax(z, axis=1)


if __name__ == "__main__":
    # Small shapes: batch=2, num_hidden=4, input_window=8, num_nodes=17, last
    # spatial dim = 1 -> flattened feature size F = 8 * 17 = 136 (exercises the
    # lane padding / masked-softmax path; Sp = 256).
    N, num_hidden, input_window, num_nodes = 2, 4, 8, 17
    F = input_window * num_nodes

    key = jax.random.PRNGKey(0)
    k_x, k_cw, k_cb, k_lw, k_lb, k_m, k_v = jax.random.split(key, 7)

    x = jax.random.normal(k_x, (N, num_hidden, input_window, num_nodes, 1),
                          dtype=jnp.float32)

    # Conv3d(num_hidden -> 1, kernel (1,1,1)): weight (1, C, 1, 1, 1), bias (1,)
    conv_w = jax.random.normal(k_cw, (1, num_hidden, 1, 1, 1), jnp.float32) * 0.2
    conv_b = jax.random.normal(k_cb, (1,), jnp.float32) * 0.1
    # BatchNorm3d(1) parameters (inference / running stats)
    bn_gamma = jnp.array([1.3], jnp.float32)
    bn_beta = jnp.array([-0.2], jnp.float32)
    bn_mean = jax.random.normal(k_m, (1,), jnp.float32) * 0.1
    bn_var = jax.random.uniform(k_v, (1,), jnp.float32, 0.5, 1.5)
    # Linear(F, F): weight (out, in), bias (out,)
    lin_w = jax.random.normal(k_lw, (F, F), jnp.float32) * (1.0 / jnp.sqrt(F))
    lin_b = jax.random.normal(k_lb, (F,), jnp.float32) * 0.05

    ref = _reference(x, conv_w, conv_b, bn_gamma, bn_beta, bn_mean, bn_var,
                     lin_w, lin_b)

    # Strict check with an f32 resident weight.
    out_f32 = policy_head_forward(x, conv_w, conv_b, bn_gamma, bn_beta,
                                  bn_mean, bn_var, lin_w, lin_b,
                                  linear_weight_dtype=jnp.float32)
    out_f32 = jax.block_until_ready(out_f32)
    assert out_f32.shape == (N, F)
    assert jnp.allclose(out_f32, ref, atol=1e-5, rtol=1e-5), "f32 mismatch vs reference"

    # Default (bf16 weight, f32 accumulate) path.
    out = policy_head_forward(x, conv_w, conv_b, bn_gamma, bn_beta,
                              bn_mean, bn_var, lin_w, lin_b)
    out = jax.block_until_ready(out)
    assert out.shape == (N, F)
    assert jnp.allclose(out, ref, atol=5e-3, rtol=5e-2), "bf16 mismatch vs reference"
    assert jnp.allclose(jnp.sum(out, axis=1), 1.0, atol=1e-5)

    print("KERNEL_OK")
</pallas_src>

<mosaic_0001>
module attributes {stable_mosaic.version = 11 : i64} {
  func.func @policy_head_kernel(%arg0: i32, %arg1: memref<4x8x256xf32, #tpu.memory_space<vmem>>, %arg2: memref<4xf32, #tpu.memory_space<smem>>, %arg3: memref<6xf32, #tpu.memory_space<smem>>, %arg4: memref<256x256xf32, #tpu.memory_space<vmem>>, %arg5: memref<1x256xf32, #tpu.memory_space<vmem>>, %arg6: memref<8x256xf32, #tpu.memory_space<vmem>>) attributes {dimension_semantics = [#tpu.dimension_semantics<parallel>], iteration_bounds = array<i64: 1>, scalar_prefetch = 0 : i64, scratch_operands = 0 : i64, tpu.core_type = #tpu.core_type<tc>, window_params = [{transform_indices = @transform_0, window_bounds = array<i64: 4, 8, 256>}, {transform_indices = @transform_1, window_bounds = array<i64: 4>}, {transform_indices = @transform_2, window_bounds = array<i64: 6>}, {pipeline_mode = #tpu.pipeline_mode<synchronous>, transform_indices = @transform_3, window_bounds = array<i64: 256, 256>}, {pipeline_mode = #tpu.pipeline_mode<synchronous>, transform_indices = @transform_4, window_bounds = array<i64: 1, 256>}, {transform_indices = @transform_5, window_bounds = array<i64: 8, 256>}]} {
    %c0 = arith.constant 0 : index
    %0 = memref.load %arg3[%c0] : memref<6xf32, #tpu.memory_space<smem>>
    %c1 = arith.constant 1 : index
    %1 = memref.load %arg3[%c1] : memref<6xf32, #tpu.memory_space<smem>>
    %c2 = arith.constant 2 : index
    %2 = memref.load %arg3[%c2] : memref<6xf32, #tpu.memory_space<smem>>
    %c3 = arith.constant 3 : index
    %3 = memref.load %arg3[%c3] : memref<6xf32, #tpu.memory_space<smem>>
    %c4 = arith.constant 4 : index
    %4 = memref.load %arg3[%c4] : memref<6xf32, #tpu.memory_space<smem>>
    %c5 = arith.constant 5 : index
    %5 = memref.load %arg3[%c5] : memref<6xf32, #tpu.memory_space<smem>>
    %6 = arith.addf %4, %5 : f32
    %7 = math.rsqrt %6 : f32
    %8 = arith.mulf %1, %7 : f32
    %9 = arith.subf %0, %3 : f32
    %10 = arith.mulf %8, %9 : f32
    %11 = arith.addf %10, %2 : f32
    %c0_0 = arith.constant 0 : index
    %c0_1 = arith.constant 0 : index
    %c0_2 = arith.constant 0 : index
    %12 = vector.load %arg1[%c0_0, %c0_1, %c0_2] : memref<4x8x256xf32, #tpu.memory_space<vmem>>, vector<1x8x256xf32>
    %13 = vector.shape_cast %12 : vector<1x8x256xf32> to vector<8x256xf32>
    %c0_3 = arith.constant 0 : index
    %14 = memref.load %arg2[%c0_3] : memref<4xf32, #tpu.memory_space<smem>>
    %15 = arith.mulf %14, %8 : f32
    %16 = vector.broadcast %15 : f32 to vector<8x256xf32>
    %17 = arith.mulf %13, %16 : vector<8x256xf32>
    %c1_4 = arith.constant 1 : index
    %c0_5 = arith.constant 0 : index
    %c0_6 = arith.constant 0 : index
    %18 = vector.load %arg1[%c1_4, %c0_5, %c0_6] : memref<4x8x256xf32, #tpu.memory_space<vmem>>, vector<1x8x256xf32>
    %19 = vector.shape_cast %18 : vector<1x8x256xf32> to vector<8x256xf32>
    %c1_7 = arith.constant 1 : index
    %20 = memref.load %arg2[%c1_7] : memref<4xf32, #tpu.memory_space<smem>>
    %21 = arith.mulf %20, %8 : f32
    %22 = vector.broadcast %21 : f32 to vector<8x256xf32>
    %23 = arith.mulf %19, %22 : vector<8x256xf32>
    %24 = arith.addf %17, %23 : vector<8x256xf32>
    %c2_8 = arith.constant 2 : index
    %c0_9 = arith.constant 0 : index
    %c0_10 = arith.constant 0 : index
    %25 = vector.load %arg1[%c2_8, %c0_9, %c0_10] : memref<4x8x256xf32, #tpu.memory_space<vmem>>, vector<1x8x256xf32>
    %26 = vector.shape_cast %25 : vector<1x8x256xf32> to vector<8x256xf32>
    %c2_11 = arith.constant 2 : index
    %27 = memref.load %arg2[%c2_11] : memref<4xf32, #tpu.memory_space<smem>>
    %28 = arith.mulf %27, %8 : f32
    %29 = vector.broadcast %28 : f32 to vector<8x256xf32>
    %30 = arith.mulf %26, %29 : vector<8x256xf32>
    %31 = arith.addf %24, %30 : vector<8x256xf32>
    %c3_12 = arith.constant 3 : index
    %c0_13 = arith.constant 0 : index
    %c0_14 = arith.constant 0 : index
    %32 = vector.load %arg1[%c3_12, %c0_13, %c0_14] : memref<4x8x256xf32, #tpu.memory_space<vmem>>, vector<1x8x256xf32>
    %33 = vector.shape_cast %32 : vector<1x8x256xf32> to vector<8x256xf32>
    %c3_15 = arith.constant 3 : index
    %34 = memref.load %arg2[%c3_15] : memref<4xf32, #tpu.memory_space<smem>>
    %35 = arith.mulf %34, %8 : f32
    %36 = vector.broadcast %35 : f32 to vector<8x256xf32>
    %37 = arith.mulf %33, %36 : vector<8x256xf32>
    %38 = arith.addf %31, %37 : vector<8x256xf32>
    %39 = vector.broadcast %11 : f32 to vector<8x256xf32>
    %40 = arith.addf %38, %39 : vector<8x256xf32>
    %cst = arith.constant 0.000000e+00 : f32
    %41 = vector.broadcast %cst : f32 to vector<8x256xf32>
    %42 = arith.cmpf ogt, %40, %41 : vector<8x256xf32>
    %cst_16 = arith.constant 0.00999999977 : f32
    %43 = vector.broadcast %cst_16 : f32 to vector<8x256xf32>
    %44 = arith.mulf %43, %40 : vector<8x256xf32>
    %45 = arith.select %42, %40, %44 : vector<8x256xi1>, vector<8x256xf32>
    %c0_17 = arith.constant 0 : index
    %c0_18 = arith.constant 0 : index
    %46 = vector.load %arg4[%c0_17, %c0_18] : memref<256x256xf32, #tpu.memory_space<vmem>>, vector<256x256xf32>
    %cst_19 = arith.constant dense<0.000000e+00> : vector<8x256xf32>
    %47 = tpu.matmul %45, %46, %cst_19 {dimension_numbers = #tpu.dot_dimension_numbers<[1], [0], [0], [1], [0, 0, 1, 1], [], []>} : vector<8x256xf32>, vector<256x256xf32>, vector<8x256xf32> -> vector<8x256xf32>
    %c0_20 = arith.constant 0 : index
    %c0_21 = arith.constant 0 : index
    %48 = vector.load %arg5[%c0_20, %c0_21] : memref<1x256xf32, #tpu.memory_space<vmem>>, vector<1x256xf32>
    %49 = vector.broadcast %48 : vector<1x256xf32> to vector<8x256xf32>
    %50 = arith.addf %47, %49 : vector<8x256xf32>
    %cst_22 = arith.constant 0.000000e+00 : f32
    %51 = vector.broadcast %cst_22 : f32 to vector<8x256xf32>
    %52 = arith.cmpf ogt, %50, %51 : vector<8x256xf32>
    %cst_23 = arith.constant 0.00999999977 : f32
    %53 = vector.broadcast %cst_23 : f32 to vector<8x256xf32>
    %54 = arith.mulf %53, %50 : vector<8x256xf32>
    %55 = arith.select %52, %50, %54 : vector<8x256xi1>, vector<8x256xf32>
    %cst_24 = arith.constant dense<0xFF800000> : vector<8xf32>
    %56 = vector.multi_reduction <maximumf>, %55, %cst_24 [1] : vector<8x256xf32> to vector<8xf32>
    %57 = vector.shape_cast %56 : vector<8xf32> to vector<8x1xf32>
    %58 = vector.broadcast %57 : vector<8x1xf32> to vector<8x256xf32>
    %59 = arith.subf %55, %58 : vector<8x256xf32>
    %60 = math.exp %59 : vector<8x256xf32>
    %cst_25 = arith.constant dense<0.000000e+00> : vector<8xf32>
    %61 = vector.multi_reduction <add>, %60, %cst_25 [1] : vector<8x256xf32> to vector<8xf32>
    %62 = vector.shape_cast %61 : vector<8xf32> to vector<8x1xf32>
    %63 = tpu.reciprocal %62 : vector<8x1xf32> -> vector<8x1xf32>
    %64 = vector.broadcast %63 : vector<8x1xf32> to vector<8x256xf32>
    %65 = arith.mulf %60, %64 : vector<8x256xf32>
    %c0_26 = arith.constant 0 : index
    %c0_27 = arith.constant 0 : index
    %66 = vector.load %arg6[%c0_26, %c0_27] : memref<8x256xf32, #tpu.memory_space<vmem>>, vector<8x256xf32>
    tpu.vector_store %arg6[%c0_26, %c0_27], %65 {strides = array<i32>} : memref<8x256xf32, #tpu.memory_space<vmem>>, vector<8x256xf32>,
    return
  }
  func.func @transform_0(%arg0: i32) -> (i32, i32, i32) {
    %c0_i32 = arith.constant 0 : i32
    %c0_i32_0 = arith.constant 0 : i32
    %c0_i32_1 = arith.constant 0 : i32
    return %c0_i32, %arg0, %c0_i32_0 : i32, i32, i32
  }
  func.func @transform_1(%arg0: i32) -> i32 {
    %c0_i32 = arith.constant 0 : i32
    %c0_i32_0 = arith.constant 0 : i32
    return %c0_i32 : i32
  }
  func.func @transform_2(%arg0: i32) -> i32 {
    %c0_i32 = arith.constant 0 : i32
    %c0_i32_0 = arith.constant 0 : i32
    return %c0_i32 : i32
  }
  func.func @transform_3(%arg0: i32) -> (i32, i32) {
    %c0_i32 = arith.constant 0 : i32
    %c0_i32_0 = arith.constant 0 : i32
    %c0_i32_1 = arith.constant 0 : i32
    return %c0_i32, %c0_i32_0 : i32, i32
  }
  func.func @transform_4(%arg0: i32) -> (i32, i32) {
    %c0_i32 = arith.constant 0 : i32
    %c0_i32_0 = arith.constant 0 : i32
    %c0_i32_1 = arith.constant 0 : i32
    return %c0_i32, %c0_i32_0 : i32, i32
  }
  func.func @transform_5(%arg0: i32) -> (i32, i32) {
    %c0_i32 = arith.constant 0 : i32
    %c0_i32_0 = arith.constant 0 : i32
    return %arg0, %c0_i32 : i32, i32
  }
}

</mosaic_0001>

<llo_original>
// kernel: tpu_custom_call.1
$region0: #{tpu_custom_call.1}
  #allocation0 [shape = 'u32[]', space=smem, size = 0x4, offset = 0x4, fixed_abs, tag = 'smem constant byte address 0x4 - core index']
  #allocation1 [shape = 'u32[144,128]{1,0:T(1,128)}', space=vmem, size = 0x12000, scoped, tag = 'internal scratch']
  %s0 = inlined_call_operand.hbm [shape: f32[4,8,256], index: 0, kind: input, shape index: {}]
  %s1 = inlined_call_operand.vmem [shape: f32[4], index: 1, kind: input, shape index: {}]
  %s2 = inlined_call_operand.vmem [shape: f32[6], index: 2, kind: input, shape index: {}]
  %s3 = inlined_call_operand.hbm [shape: f32[256,256], index: 3, kind: input, shape index: {}]
  %s4 = inlined_call_operand.vmem [shape: f32[1,256], index: 4, kind: input, shape index: {}]
  %s5 = inlined_call_operand.hbm [shape: f32[8,256], index: 5, kind: output, shape index: {}]
  %s6 = sld [smem:[#allocation0]]
  $region46: #{tpu_custom_call.1} parent=0
    _
  %s8 = ssub.s32 1, %s6
  %s9 = scalar_select 0, %s8, %s6
  $region1: #{tpu_custom_call.1} parent=0
    #allocation2 [shape = 'u8[32768]{0}', space=vmem, size = 0x8000, scoped, tag = 'input window, operand 0, single buffered']
    #allocation3 [shape = 's32[1]{0}', space=sflag, size = 0x4, scoped, tag = 'scoped memory for tpu_custom_call.1']
    #allocation4 [shape = 's32[1]{0}', space=sflag, size = 0x4, scoped, tag = 'scoped memory for tpu_custom_call.1']
    #allocation5 [shape = 's32[1]{0}', space=sflag, size = 0x4, scoped, tag = 'scoped memory for tpu_custom_call.1']
    #allocation6 [shape = 'u8[512]{0}', space=smem, size = 0x200, scoped, tag = 'input window, operand 1, single buffered']
    #allocation7 [shape = 'u8[512]{0}', space=smem, size = 0x200, scoped, tag = 'input window, operand 2, single buffered']
    #allocation8 [shape = 's32[1]{0}', space=sflag, size = 0x4, scoped, tag = 'scoped memory for tpu_custom_call.1']
    #allocation9 [shape = 'u8[262144]{0}', space=vmem, size = 0x40000, scoped, tag = 'input window, operand 3, single buffered']
    #allocation10 [shape = 's32[1]{0}', space=sflag, size = 0x4, scoped, tag = 'scoped memory for tpu_custom_call.1']
    #allocation11 [shape = 'u8[8192]{0}', space=vmem, size = 0x2000, scoped, tag = 'output window, operand 0, single buffered']
    %10 = vsyncpa [#allocation3], 0
    %11 = vsyncpa [#allocation5], 0
    %12 = vsyncpa [#allocation8], 0
    %13 = vsyncpa [#allocation10], 0
    %14 = vsyncpa [#allocation4], 0
    // Predicated region
    $region2: #{tpu_custom_call.1} parent=1 // pred_check
      _
    $region3: #{tpu_custom_call.1} parent=1 // pred_check_branch
      %16 = sbr.rel (0) target = $region5
    $region4: #{tpu_custom_call.1} parent=1 // pred_region
      %s18 = ssub.s32 1024, 1024
      %19 = vsyncadd [#allocation3], %s18
      %s20 = sshll.u32 [#allocation2], 4
      %s21 = int_to_ptr.vmem [resolvable:$true] %s20
      %26 = dma.hbm_to_vmem [thread:$0]  %s0, 1024, %s21, [#allocation3], 256, 256, 16
    $region5: #{tpu_custom_call.1} parent=1 // pred_fallthru
      _
    // Predicated region
    $region6: #{tpu_custom_call.1} parent=1 // pred_check
      _
    $region7: #{tpu_custom_call.1} parent=1 // pred_check_branch
      %28 = sbr.rel (0) target = $region9
    $region8: #{tpu_custom_call.1} parent=1 // pred_region
      %s30 = ssub.s32 16, 16
      %31 = vsyncadd [#allocation5], %s30
      %s33 = sshll.u32 %s1, 4
      %s34 = int_to_ptr.vmem [resolvable:$true] %s33
      %36 = dma.vmem_to_smem %s34, 16, [#allocation6], [#allocation5]
    $region9: #{tpu_custom_call.1} parent=1 // pred_fallthru
      _
    // Predicated region
    $region10: #{tpu_custom_call.1} parent=1 // pred_check
      _
    $region11: #{tpu_custom_call.1} parent=1 // pred_check_branch
      %38 = sbr.rel (0) target = $region13
    $region12: #{tpu_custom_call.1} parent=1 // pred_region
      %s40 = ssub.s32 16, 16
      %41 = vsyncadd [#allocation8], %s40
      %s43 = sshll.u32 %s2, 4
      %s44 = int_to_ptr.vmem [resolvable:$true] %s43
      %46 = dma.vmem_to_smem %s44, 16, [#allocation7], [#allocation8]
    $region13: #{tpu_custom_call.1} parent=1 // pred_fallthru
      _
    // Predicated region
    $region14: #{tpu_custom_call.1} parent=1 // pred_check
      _
    $region15: #{tpu_custom_call.1} parent=1 // pred_check_branch
      %48 = sbr.rel (0) target = $region17
    $region16: #{tpu_custom_call.1} parent=1 // pred_region
      %s50 = ssub.s32 8192, 8192
      %51 = vsyncadd [#allocation10], %s50
      %s52 = sshll.u32 [#allocation9], 4
      %s53 = int_to_ptr.vmem [resolvable:$true] %s52
      %58 = dma.hbm_to_vmem [thread:$0]  %s3, 8192, %s53, [#allocation10], 256, 256, 16
    $region17: #{tpu_custom_call.1} parent=1 // pred_fallthru
      _
    // Predicated region
    $region18: #{tpu_custom_call.1} parent=1 // pred_check
      _
    $region19: #{tpu_custom_call.1} parent=1 // pred_check_branch
      %60 = sbr.rel (0) target = $region21
    $region20: #{tpu_custom_call.1} parent=1 // pred_region
      _
    $region21: #{tpu_custom_call.1} parent=1 // pred_fallthru
      _
    // Predicated region
    $region22: #{tpu_custom_call.1} parent=1 // pred_check
      _
    $region23: #{tpu_custom_call.1} parent=1 // pred_check_branch
      %62 = sbr.rel (0) target = $region25
    $region24: #{tpu_custom_call.1} parent=1 // pred_region
      %63 = dma.done [#allocation3], 1024
    $region25: #{tpu_custom_call.1} parent=1 // pred_fallthru
      _
    // Predicated region
    $region26: #{tpu_custom_call.1} parent=1 // pred_check
      _
    $region27: #{tpu_custom_call.1} parent=1 // pred_check_branch
      %65 = sbr.rel (0) target = $region29
    $region28: #{tpu_custom_call.1} parent=1 // pred_region
      %66 = dma.done [#allocation5], 16
    $region29: #{tpu_custom_call.1} parent=1 // pred_fallthru
      _
    // Predicated region
    $region30: #{tpu_custom_call.1} parent=1 // pred_check
      _
    $region31: #{tpu_custom_call.1} parent=1 // pred_check_branch
      %68 = sbr.rel (0) target = $region33
    $region32: #{tpu_custom_call.1} parent=1 // pred_region
      %69 = dma.done [#allocation8], 16
    $region33: #{tpu_custom_call.1} parent=1 // pred_fallthru
      _
    // Predicated region
    $region34: #{tpu_custom_call.1} parent=1 // pred_check
      _
    $region35: #{tpu_custom_call.1} parent=1 // pred_check_branch
      %71 = sbr.rel (0) target = $region37
    $region36: #{tpu_custom_call.1} parent=1 // pred_region
      %72 = dma.done [#allocation10], 8192
    $region37: #{tpu_custom_call.1} parent=1 // pred_fallthru
      _
    %73 = sfence
    %s74 = sld [smem:[#allocation7]]
    %s75 = sld [smem:[#allocation7 + $0x1]]
    %s76 = sld [smem:[#allocation7 + $0x2]]
    %s77 = sld [smem:[#allocation7 + $0x3]]
    %s78 = sld [smem:[#allocation7 + $0x4]]
    %s79 = sld [smem:[#allocation7 + $0x5]]
    %s80 = sadd.f32 %s78, %s79
    %v81 = vstv %s80
    %v82 = vrsqrt.pop %v81
    %s83 = vtos %v82
    %s84 = smul.f32 %s75, %s83
    %s85 = ssub.f32 %s74, %s77
    %s86 = smul.f32 %s84, %s85
    %s87 = sadd.f32 %s86, %s76
    %v88 = vld [vmem:[#allocation2] sm:$0xff]
    %v89 = vld [vmem:[#allocation2 + $0x8] sm:$0xff]
    %s90 = sld [smem:[#allocation6]]
    %s91 = smul.f32 %s90, %s84
    %v92 = vstv %s91
    %v93 = vmul.f32 %v88, %v92
    %v94 = vmul.f32 %v89, %v92
    %s95 = scalar_lea.vmem [#allocation2], 16
    %v96 = vld [vmem:[%s95] sm:$0xff]
    %v97 = vld [vmem:[%s95 + $0x8] sm:$0xff]
    %s98 = sld [smem:[#allocation6 + $0x1]]
    %s99 = smul.f32 %s98, %s84
    %v100 = vstv %s99
    %v101 = vmul.f32 %v96, %v100
    %v102 = vmul.f32 %v97, %v100
    %v103 = vadd.f32 %v93, %v101
    %v104 = vadd.f32 %v94, %v102
    %s105 = scalar_lea.vmem [#allocation2], 32
    %v106 = vld [vmem:[%s105] sm:$0xff]
    %v107 = vld [vmem:[%s105 + $0x8] sm:$0xff]
    %s108 = sld [smem:[#allocation6 + $0x2]]
    %s109 = smul.f32 %s108, %s84
    %v110 = vstv %s109
    %v111 = vmul.f32 %v106, %v110
    %v112 = vmul.f32 %v107, %v110
    %v113 = vadd.f32 %v103, %v111
    %v114 = vadd.f32 %v104, %v112
    %s115 = scalar_lea.vmem [#allocation2], 48
    %v116 = vld [vmem:[%s115] sm:$0xff]
    %v117 = vld [vmem:[%s115 + $0x8] sm:$0xff]
    %s118 = sld [smem:[#allocation6 + $0x3]]
    %s119 = smul.f32 %s118, %s84
    %v120 = vstv %s119
    %v121 = vmul.f32 %v116, %v120
    %v122 = vmul.f32 %v117, %v120
    %v123 = vadd.f32 %v113, %v121
    %v124 = vadd.f32 %v114, %v122
    %v125 = vstv %s87
    %v126 = vadd.f32 %v123, %v125
    %v127 = vadd.f32 %v124, %v125
    %vm128 = vcmp.gt.f32.partialorder %v126, 0.0
    %vm129 = vcmp.gt.f32.partialorder %v127, 0.0
    %v130 = vmul.f32 %v126, 0.01
    %v131 = vmul.f32 %v127, 0.01
    %v132 = vsel %vm128, %v126, %v130
    %v133 = vsel %vm129, %v127, %v131
    %v134 = vld [vmem:[#allocation9] sm:$0xff]
    %v135 = vld [vmem:[#allocation9 + $0x8] sm:$0xff]
    %v136 = vld [vmem:[#allocation9 + $0x10] sm:$0xff]
    %v137 = vld [vmem:[#allocation9 + $0x18] sm:$0xff]
    %v138 = vld [vmem:[#allocation9 + $0x20] sm:$0xff]
    %v139 = vld [vmem:[#allocation9 + $0x28] sm:$0xff]
    %v140 = vld [vmem:[#allocation9 + $0x30] sm:$0xff]
    %v141 = vld [vmem:[#allocation9 + $0x38] sm:$0xff]
    %v142 = vld [vmem:[#allocation9 + $0x40] sm:$0xff]
    %v143 = vld [vmem:[#allocation9 + $0x48] sm:$0xff]
    %v144 = vld [vmem:[#allocation9 + $0x50] sm:$0xff]
    %v145 = vld [vmem:[#allocation9 + $0x58] sm:$0xff]
    %v146 = vld [vmem:[#allocation9 + $0x60] sm:$0xff]
    %v147 = vld [vmem:[#allocation9 + $0x68] sm:$0xff]
    %v148 = vld [vmem:[#allocation9 + $0x70] sm:$0xff]
    %v149 = vld [vmem:[#allocation9 + $0x78] sm:$0xff]
    %v150 = vld [vmem:[#allocation9 + $0x80] sm:$0xff]
    %v151 = vld [vmem:[#allocation9 + $0x88] sm:$0xff]
    %v152 = vld [vmem:[#allocation9 + $0x90] sm:$0xff]
    %v153 = vld [vmem:[#allocation9 + $0x98] sm:$0xff]
    %v154 = vld [vmem:[#allocation9 + $0xa0] sm:$0xff]
    %v155 = vld [vmem:[#allocation9 + $0xa8] sm:$0xff]
    %v156 = vld [vmem:[#allocation9 + $0xb0] sm:$0xff]
    %v157 = vld [vmem:[#allocation9 + $0xb8] sm:$0xff]
    %v158 = vld [vmem:[#allocation9 + $0xc0] sm:$0xff]
    %v159 = vld [vmem:[#allocation9 + $0xc8] sm:$0xff]
    %v160 = vld [vmem:[#allocation9 + $0xd0] sm:$0xff]
    %v161 = vld [vmem:[#allocation9 + $0xd8] sm:$0xff]
    %v162 = vld [vmem:[#allocation9 + $0xe0] sm:$0xff]
    %v163 = vld [vmem:[#allocation9 + $0xe8] sm:$0xff]
    %v164 = vld [vmem:[#allocation9 + $0xf0] sm:$0xff]
    %v165 = vld [vmem:[#allocation9 + $0xf8] sm:$0xff]
    %v166 = vld [vmem:[#allocation9 + $0x100] sm:$0xff]
    %v167 = vld [vmem:[#allocation9 + $0x108] sm:$0xff]
    %v168 = vld [vmem:[#allocation9 + $0x110] sm:$0xff]
    %v169 = vld [vmem:[#allocation9 + $0x118] sm:$0xff]
    %v170 = vld [vmem:[#allocation9 + $0x120] sm:$0xff]
    %v171 = vld [vmem:[#allocation9 + $0x128] sm:$0xff]
    %v172 = vld [vmem:[#allocation9 + $0x130] sm:$0xff]
    %v173 = vld [vmem:[#allocation9 + $0x138] sm:$0xff]
    %v174 = vld [vmem:[#allocation9 + $0x140] sm:$0xff]
    %v175 = vld [vmem:[#allocation9 + $0x148] sm:$0xff]
    %v176 = vld [vmem:[#allocation9 + $0x150] sm:$0xff]
    %v177 = vld [vmem:[#allocation9 + $0x158] sm:$0xff]
    %v178 = vld [vmem:[#allocation9 + $0x160] sm:$0xff]
    %v179 = vld [vmem:[#allocation9 + $0x168] sm:$0xff]
    %v180 = vld [vmem:[#allocation9 + $0x170] sm:$0xff]
    %v181 = vld [vmem:[#allocation9 + $0x178] sm:$0xff]
    %v182 = vld [vmem:[#allocation9 + $0x180] sm:$0xff]
    %v183 = vld [vmem:[#allocation9 + $0x188] sm:$0xff]
    %v184 = vld [vmem:[#allocation9 + $0x190] sm:$0xff]
    %v185 = vld [vmem:[#allocation9 + $0x198] sm:$0xff]
    %v186 = vld [vmem:[#allocation9 + $0x1a0] sm:$0xff]
    %v187 = vld [vmem:[#allocation9 + $0x1a8] sm:$0xff]
    %v188 = vld [vmem:[#allocation9 + $0x1b0] sm:$0xff]
    %v189 = vld [vmem:[#allocation9 + $0x1b8] sm:$0xff]
    %v190 = vld [vmem:[#allocation9 + $0x1c0] sm:$0xff]
    %v191 = vld [vmem:[#allocation9 + $0x1c8] sm:$0xff]
    %v192 = vld [vmem:[#allocation9 + $0x1d0] sm:$0xff]
    %v193 = vld [vmem:[#allocation9 + $0x1d8] sm:$0xff]
    %v194 = vld [vmem:[#allocation9 + $0x1e0] sm:$0xff]
    %v195 = vld [vmem:[#allocation9 + $0x1e8] sm:$0xff]
    %v196 = vld [vmem:[#allocation9 + $0x1f0] sm:$0xff]
    %v197 = vld [vmem:[#allocation9 + $0x1f8] sm:$0xff]
    %v198 = vld [vmem:[%s4] sm:$0x3]
    %v200 = vlaneseq
    %v201 = vshrl.u32 %v200, 7
    %v202 = vsub.s32 0, %v201
    %v203 = vrot.slane %v198, %v202
    %v204 = vlaneseq
    %v205 = vshrl.u32 %v204, 7
    %v206 = vsub.s32 1, %v205
    %v207 = vrot.slane %v198, %v206
    %210 = vmatprep.subr.mxu0 %v135
    %211 = vmatpush1.msra.mxu0 %v134
    %212 = vmatprep.subr.mxu0 %v137
    %213 = vmatpush1.msra.mxu0 %v136
    %214 = vmatprep.subr.mxu0 %v139
    %215 = vmatpush1.msra.mxu0 %v138
    %216 = vmatprep.subr.mxu0 %v141
    %217 = vmatpush1.msra.mxu0 %v140
    %218 = vmatprep.subr.mxu0 %v143
    %219 = vmatpush1.msra.mxu0 %v142
    %220 = vmatprep.subr.mxu0 %v145
    %221 = vmatpush1.msra.mxu0 %v144
    %222 = vmatprep.subr.mxu0 %v147
    %223 = vmatpush1.msra.mxu0 %v146
    %224 = vmatprep.subr.mxu0 %v149
    %225 = vmatpush1.msra.mxu0 %v148
    %226 = vmatprep.subr.mxu0 %v151
    %227 = vmatpush1.msra.mxu0 %v150
    %228 = vmatprep.subr.mxu0 %v153
    %229 = vmatpush1.msra.mxu0 %v152
    %230 = vmatprep.subr.mxu0 %v155
    %231 = vmatpush1.msra.mxu0 %v154
    %232 = vmatprep.subr.mxu0 %v157
    %233 = vmatpush1.msra.mxu0 %v156
    %234 = vmatprep.subr.mxu0 %v159
    %235 = vmatpush1.msra.mxu0 %v158
    %236 = vmatprep.subr.mxu0 %v161
    %237 = vmatpush1.msra.mxu0 %v160
    %238 = vmatprep.subr.mxu0 %v163
    %239 = vmatpush1.msra.mxu0 %v162
    %240 = vmatprep.subr.mxu0 %v165
    %241 = vmatpush1.msra.mxu0 %v164
    %242 = vmatprep.subr.mxu0 %v167
    %243 = vmatpush1.msra.mxu0 %v166
    %244 = vmatprep.subr.mxu0 %v169
    %245 = vmatpush1.msra.mxu0 %v168
    %246 = vmatprep.subr.mxu0 %v171
    %247 = vmatpush1.msra.mxu0 %v170
    %248 = vmatprep.subr.mxu0 %v173
    %249 = vmatpush1.msra.mxu0 %v172
    %250 = vmatprep.subr.mxu0 %v175
    %251 = vmatpush1.msra.mxu0 %v174
    %252 = vmatprep.subr.mxu0 %v177
    %253 = vmatpush1.msra.mxu0 %v176
    %254 = vmatprep.subr.mxu0 %v179
    %255 = vmatpush1.msra.mxu0 %v178
    %256 = vmatprep.subr.mxu0 %v181
    %257 = vmatpush1.msra.mxu0 %v180
    %258 = vmatprep.subr.mxu0 %v183
    %259 = vmatpush1.msra.mxu0 %v182
    %260 = vmatprep.subr.mxu0 %v185
    %261 = vmatpush1.msra.mxu0 %v184
    %262 = vmatprep.subr.mxu0 %v187
    %263 = vmatpush1.msra.mxu0 %v186
    %264 = vmatprep.subr.mxu0 %v189
    %265 = vmatpush1.msra.mxu0 %v188
    %266 = vmatprep.subr.mxu0 %v191
    %267 = vmatpush1.msra.mxu0 %v190
    %268 = vmatprep.subr.mxu0 %v193
    %269 = vmatpush1.msra.mxu0 %v192
    %270 = vmatprep.subr.mxu0 %v195
    %271 = vmatpush1.msra.mxu0 %v194
    %272 = vmatprep.subr.mxu0 %v197
    %273 = vmatpush1.msra.mxu0 %v196
    %274 = vmatprep.mubr.f32.mxu0 %v133
    %275 = vmatmul.mubr.f32.gmra.mrb[0].mxu0 %v132
    %v276 = vpop.f32.mrb[0].mxu0
    %v277 = vadd.f32 %v203, %v276
    %v278 = vpop.f32.mrb[0].mxu0
    %v279 = vadd.f32 %v207, %v278
    %280 = vdwg.mxu0
    %vm281 = vcmp.gt.f32.partialorder %v277, 0.0
    %vm282 = vcmp.gt.f32.partialorder %v279, 0.0
    %v283 = vmul.f32 %v277, 0.01
    %v284 = vmul.f32 %v279, 0.01
    %v285 = vsel %vm281, %v277, %v283
    %v286 = vsel %vm282, %v279, %v284
    %v287 = vmax.f32 %v285, %v286
    %288 = vmax.xlane.f32.xlu0 %v287
    %v289 = vpop.xlane.xlu0 %288
    %v290 = vsub.f32 %v285, %v289
    %v291 = vsub.f32 %v286, %v289
    %v292 = vmul.f32 %v290, 1.442695
    %v293 = vpow.pop %v292
    %v294 = vmul.f32 %v291, 1.442695
    %v295 = vpow.pop %v294
    %v296 = vadd.f32 %v293, %v295
    %297 = vadd.xlane.f32.xlu0 %v296
    %v298 = vpop.xlane.xlu0 %297
    %v299 = vrcp.pop %v298
    %v300 = vmul.f32 %v293, %v299
    %v301 = vmul.f32 %v295, %v299
    %302 = vst [vmem:[#allocation11] sm:$0xff] %v300
    %303 = vst [vmem:[#allocation11 + $0x8] sm:$0xff] %v301
    // Predicated region
    $region38: #{tpu_custom_call.1} parent=1 // pred_check
      _
    $region39: #{tpu_custom_call.1} parent=1 // pred_check_branch
      %305 = sbr.rel (0) target = $region41
    $region40: #{tpu_custom_call.1} parent=1 // pred_region
      %s307 = ssub.s32 256, 256
      %308 = vsyncadd [#allocation4], %s307
      %s310 = sshll.u32 [#allocation11], 4
      %s311 = int_to_ptr.vmem [resolvable:$true] %s310
      %313 = dma.vmem_to_hbm [thread:$0]  %s311, 256, %s5, [#allocation4]
    $region41: #{tpu_custom_call.1} parent=1 // pred_fallthru
      _
    // Predicated region
    $region42: #{tpu_custom_call.1} parent=1 // pred_check
      _
    $region43: #{tpu_custom_call.1} parent=1 // pred_check_branch
      %315 = sbr.rel (0) target = $region45
    $region44: #{tpu_custom_call.1} parent=1 // pred_region
      %316 = dma.done [#allocation4], 256
    $region45: #{tpu_custom_call.1} parent=1 // pred_fallthru
      _
    %317 = vsyncpa [#allocation3], 1
    %318 = vsyncpa [#allocation10], 1
    %319 = vsyncpa [#allocation4], 1
    %320 = vsyncpa [#allocation5], 1
    %321 = vsyncpa [#allocation8], 1

</llo_original>
